<compile_context>
chip_gen: v7x
topology: tpu7x:2x2x1
jax: 0.10.0
libtpu: 0.0.40
codegen_flags: <defaults>
</compile_context>

<pallas_src>
import functools

import jax
import jax.numpy as jnp
from jax.experimental import pallas as pl
from jax.experimental.pallas import tpu as pltpu

_EPS = 1e-5  # nn.BatchNorm2d default eps


def _round_up(v, m):
    return ((v + m - 1) // m) * m


def _non_lin(x, kind):
    if kind == "ReLU":
        return jnp.maximum(x, 0.0)
    if kind == "LeakyReLU":
        return jnp.where(x >= 0, x, 0.01 * x)
    if kind == "tanh":
        return jnp.tanh(x)
    raise ValueError(f"unknown non_lin {kind}")


def _param_layout(C, HD, N):
    """Row offsets of the packed (rows, width) parameter buffer."""
    width = _round_up(max(HD, N), 128)
    r_wp = 0                                   # (C, HD)   pool weights (transposed)
    r_wbd = _round_up(C, 8)                    # (HD, HD)  block-diag pointwise weights^T
    r_vec = r_wbd + _round_up(HD, 8)           # 4 rows of BN gammas / betas
    r_m3 = r_vec + 8                           # (C*HD, N) expanded merge weights
    r_am = r_m3 + _round_up(C * HD, 8)         # (N, N)    BN group mask (0/1)
    rows = r_am + _round_up(N, 8)
    return dict(width=width, r_wp=r_wp, r_wbd=r_wbd, r_vec=r_vec,
                r_m3=r_m3, r_am=r_am, rows=rows)


def _bhrf_kernel(x_ref, params_ref, o_ref, *, dims, lay, pointwise_conv_count,
                 non_lin):
    B, C, S, d, n_head, c_out = dims
    HD = n_head * d
    N = c_out * d
    r_wp, r_wbd, r_vec, r_m3, r_am = (lay["r_wp"], lay["r_wbd"], lay["r_vec"],
                                      lay["r_m3"], lay["r_am"])

    xb = x_ref[...]                                        # (B, C, S)  f32

    # ---- Pool_1_to_1_First: logits for all heads in one batched matmul ------
    # contraction over c (second-minor of both operands) -- same pattern as the
    # flash-attention dV einsum, known-good lowering.
    wp_t = params_ref[r_wp:r_wp + C, 0:HD]                 # (C, HD)
    wp_b = jnp.broadcast_to(wp_t, (B, C, HD))              # tiny, hoisted once
    logits = jnp.einsum("bcs,bch->bsh", xb, wp_b,
                        preferred_element_type=jnp.float32)  # (B, S, HD)
    m = jnp.max(logits, axis=1, keepdims=True)
    e = jnp.exp(logits - m)
    s = jnp.sum(e, axis=1, keepdims=True)
    p = e / s                                              # exact softmax over S

    # ---- Pool_1_to_1_MatMul: all heads & batch in one batched matmul --------
    head = jnp.einsum("bcs,bsh->bch", xb, p,
                      preferred_element_type=jnp.float32)  # (B, C, HD)

    if pointwise_conv_count == 1:
        # Pointwise_Conv_Shortcut fused algebraically:  y = head @ Wbd^T
        wbd_t = params_ref[r_wbd:r_wbd + HD, 0:HD]         # (HD, HD) block-diag^T
        wbd_b = jnp.broadcast_to(wbd_t, (B, HD, HD))
        y = jnp.einsum("bch,bhk->bck", head, wbd_b,
                       preferred_element_type=jnp.float32)  # (B, C, HD)
        # Per-head BatchNorm2d(d): each lane of HD is one (head, channel);
        # stats over (B, C) elements, single pass via E[x^2] - mean^2.
        inv_cnt = 1.0 / float(B * C)
        sum_y = jnp.sum(jnp.sum(y, axis=1, keepdims=True), axis=0, keepdims=True)
        sum_y2 = jnp.sum(jnp.sum(y * y, axis=1, keepdims=True), axis=0,
                         keepdims=True)
        mean = sum_y * inv_cnt
        var = sum_y2 * inv_cnt - mean * mean
        g_pw = params_ref[r_vec:r_vec + 1, 0:HD].reshape(1, 1, HD)
        b_pw = params_ref[r_vec + 1:r_vec + 2, 0:HD].reshape(1, 1, HD)
        yn = (y - mean) * jax.lax.rsqrt(var + _EPS) * g_pw + b_pw
        head = head + _non_lin(yn, non_lin)                # shortcut add

    # ---- heads_merging: lane-dense (B, c_out*d) slab ------------------------
    # merged[b, o*d+k] = sum_{h,c} w_merge[o, h*C+c] * head[b, c, h*d+k]
    # C independent small dots against the pre-expanded merge weight, combined
    # with a balanced tree-sum (no serial accumulator chain).
    parts = []
    for c in range(C):
        mc = params_ref[r_m3 + c * HD:r_m3 + (c + 1) * HD, 0:N]   # (HD, N)
        parts.append(jnp.dot(head[:, c, :], mc,
                             preferred_element_type=jnp.float32))  # (B, N)
    while len(parts) > 1:
        nxt = [parts[i] + parts[i + 1] for i in range(0, len(parts) - 1, 2)]
        if len(parts) % 2:
            nxt.append(parts[-1])
        parts = nxt
    acc = parts[0]                                         # (B, N)

    # BatchNorm2d(c_out): per output channel o (a group of d lanes), stats over
    # (B, d) elements.  Group sums via two *independent* lane-dense matmuls
    # against the 0/1 group mask; variance via E[x^2] - mean^2.
    a_m = params_ref[r_am:r_am + N, 0:N]                   # (N, N) group mask
    inv_gcnt = 1.0 / float(B * d)
    sum0 = jnp.sum(acc, axis=0, keepdims=True)             # (1, N)
    sum1 = jnp.sum(acc * acc, axis=0, keepdims=True)       # (1, N)
    mean_l = jnp.dot(sum0, a_m, preferred_element_type=jnp.float32) * inv_gcnt
    ex2_l = jnp.dot(sum1, a_m, preferred_element_type=jnp.float32) * inv_gcnt
    var_l = ex2_l - mean_l * mean_l
    g_l = params_ref[r_vec + 2:r_vec + 3, 0:N]
    b_l = params_ref[r_vec + 3:r_vec + 4, 0:N]
    out = (acc - mean_l) * jax.lax.rsqrt(var_l + _EPS) * g_l + b_l
    o_ref[...] = _non_lin(out, non_lin)                    # (B, c_out*d)


def pack_params(params, *, n_head, C, d, c_out):
    """Build the packed, B-independent parameter buffer.

    Build ONCE per parameter set (e.g. under jit on parameter update) and
    reuse across forward calls -> a single HBM->VMEM DMA per call.
    """
    w_pool, w_pw, g_pw, b_pw, w_merge, g_m, b_m = params
    HD = n_head * d
    N = c_out * d
    lay = _param_layout(C, HD, N)

    wp_t = jnp.transpose(w_pool.astype(jnp.float32).reshape(HD, C))   # (C, HD)

    eye_h = jnp.eye(n_head, dtype=jnp.float32)
    w_bd = jnp.einsum("hg,hij->higj", eye_h,
                      w_pw.astype(jnp.float32)).reshape(HD, HD)
    w_bd_t = jnp.transpose(w_bd)                                      # (HD, HD)

    wm_r = w_merge.astype(jnp.float32).reshape(c_out, n_head, C)
    eye_d = jnp.eye(d, dtype=jnp.float32)
    m3 = jnp.einsum("ohc,pq->chpoq", wm_r, eye_d).reshape(C * HD, N)

    groups = jnp.arange(N) // d
    a_m = (groups[:, None] == groups[None, :]).astype(jnp.float32)    # 0/1 mask
    g_lane = jnp.repeat(g_m.astype(jnp.float32), d)
    b_lane = jnp.repeat(b_m.astype(jnp.float32), d)

    P = jnp.zeros((lay["rows"], lay["width"]), jnp.float32)
    P = P.at[lay["r_wp"]:lay["r_wp"] + C, 0:HD].set(wp_t)
    P = P.at[lay["r_wbd"]:lay["r_wbd"] + HD, 0:HD].set(w_bd_t)
    P = P.at[lay["r_vec"], 0:HD].set(g_pw.astype(jnp.float32).reshape(HD))
    P = P.at[lay["r_vec"] + 1, 0:HD].set(b_pw.astype(jnp.float32).reshape(HD))
    P = P.at[lay["r_vec"] + 2, 0:N].set(g_lane)
    P = P.at[lay["r_vec"] + 3, 0:N].set(b_lane)
    P = P.at[lay["r_m3"]:lay["r_m3"] + C * HD, 0:N].set(m3)
    P = P.at[lay["r_am"]:lay["r_am"] + N, 0:N].set(a_m)
    return P


def block_height_reducing_filtering(x, packed_params, *, n_head, d, c_out,
                                    pointwise_conv_count, non_lin):
    """x: (B, C_in, H_in, 1) NCHW -> (B, c_out, d, 1).  packed_params: pack_params()."""
    B, C, H, W = x.shape
    assert W == 1, "module semantics require a trailing width of 1"
    S = H
    HD = n_head * d
    N = c_out * d
    lay = _param_layout(C, HD, N)
    assert packed_params.shape == (lay["rows"], lay["width"])

    # Single x orientation; reshape from NCHW (drop trailing 1) is free.
    x_bcs = x.reshape(B, C, S).astype(jnp.float32)

    # Explicit VMEM budget (replaces the old hard-coded byte assert); leave
    # headroom for compiler scratch.  Tile with a grid before this grows past
    # the v7x 64 MiB / v5e 16-MiB-default scoped budgets.
    vmem_needed = 4 * (x_bcs.size + packed_params.size + B * N)
    vmem_limit = int(min(max(2 * vmem_needed + (1 << 20), 4 << 20), 32 << 20))

    kernel = functools.partial(
        _bhrf_kernel,
        dims=(B, C, S, d, n_head, c_out),
        lay=lay,
        pointwise_conv_count=pointwise_conv_count,
        non_lin=non_lin,
    )
    vmem = pl.BlockSpec(memory_space=pltpu.MemorySpace.VMEM)
    out = pl.pallas_call(
        kernel,
        out_shape=jax.ShapeDtypeStruct((B, N), jnp.float32),
        in_specs=[vmem, vmem],
        out_specs=vmem,
        compiler_params=pltpu.CompilerParams(vmem_limit_bytes=vmem_limit),
    )(x_bcs, packed_params)

    # Wrapper-side layout plumbing only.
    return out.reshape(B, c_out, d, 1)


# ----------------------------- pure-jnp reference ----------------------------
def reference(x, params, *, n_head, pointwise_conv_count, non_lin):
    """Direct per-head transcription of the PyTorch module (training-mode BN)."""
    w_pool, w_pw, g_pw, b_pw, w_merge, g_m, b_m = params
    B, C, H, _ = x.shape
    x3 = x.reshape(B, C, H).astype(jnp.float32)
    d = w_pool.shape[1]
    heads = []
    for h in range(n_head):
        logits = jnp.einsum("dc,bcs->bds", w_pool[h], x3)
        logits = logits - jnp.max(logits, axis=2, keepdims=True)
        e = jnp.exp(logits)
        spool = e / jnp.sum(e, axis=2, keepdims=True)              # softmax dim=2
        head = jnp.einsum("bcs,bds->bcd", x3, spool)               # (B, C, d)
        if pointwise_conv_count == 1:
            ht = jnp.transpose(head, (0, 2, 1))                    # (B, d, C)
            y = jnp.einsum("ij,bjc->bic", w_pw[h], ht)             # (B, d, C)
            mean = jnp.mean(y, axis=(0, 2), keepdims=True)
            var = jnp.var(y, axis=(0, 2), keepdims=True)
            yn = (y - mean) * jax.lax.rsqrt(var + _EPS)
            yn = yn * g_pw[h][None, :, None] + b_pw[h][None, :, None]
            ht = ht + _non_lin(yn, non_lin)
            head = jnp.transpose(ht, (0, 2, 1))
        heads.append(head)
    cat = jnp.concatenate(heads, axis=1)                           # (B, n_head*C, d)
    merged = jnp.einsum("oJ,bJk->bok", w_merge, cat)               # (B, c_out, d)
    mean = jnp.mean(merged, axis=(0, 2), keepdims=True)
    var = jnp.var(merged, axis=(0, 2), keepdims=True)
    mn = (merged - mean) * jax.lax.rsqrt(var + _EPS)
    mn = mn * g_m[None, :, None] + b_m[None, :, None]
    return _non_lin(mn, non_lin)[..., None]


if __name__ == "__main__":
    # Small shapes consistent with the module's forward pass.
    B = 2
    n_head = 2
    channel_count_in = 4
    height_in = 16
    height_out = 8          # d
    channel_count_out = 8
    pointwise_conv_count = 1
    non_lin = "ReLU"

    key = jax.random.PRNGKey(0)
    kx, k1, k2, k3 = jax.random.split(key, 4)

    x = jax.random.normal(kx, (B, channel_count_in, height_in, 1), jnp.float32)

    # Deterministic synthetic params (conv weights ~ N(0, 0.3^2); BatchNorm
    # affine params at their PyTorch defaults gamma=1, beta=0).
    w_pool = 0.3 * jax.random.normal(k1, (n_head, height_out, channel_count_in),
                                     jnp.float32)
    w_pw = 0.3 * jax.random.normal(k2, (n_head, height_out, height_out),
                                   jnp.float32)
    g_pw = jnp.ones((n_head, height_out), jnp.float32)
    b_pw = jnp.zeros((n_head, height_out), jnp.float32)
    w_merge = 0.3 * jax.random.normal(
        k3, (channel_count_out, channel_count_in * n_head), jnp.float32)
    g_m = jnp.ones((channel_count_out,), jnp.float32)
    b_m = jnp.zeros((channel_count_out,), jnp.float32)

    params = (w_pool, w_pw, g_pw, b_pw, w_merge, g_m, b_m)

    # Parameters are packed ONCE (cache across forward calls).
    P = pack_params(params, n_head=n_head, C=channel_count_in,
                    d=height_out, c_out=channel_count_out)
    P = jax.block_until_ready(P)

    fwd = jax.jit(functools.partial(
        block_height_reducing_filtering,
        n_head=n_head, d=height_out, c_out=channel_count_out,
        pointwise_conv_count=pointwise_conv_count, non_lin=non_lin))

    out = jax.block_until_ready(fwd(x, P))

    ref = reference(x, params, n_head=n_head,
                    pointwise_conv_count=pointwise_conv_count, non_lin=non_lin)

    assert out.shape == (B, channel_count_out, height_out, 1), out.shape
    # Exact softmax reciprocal -> tight tolerance (only f32 reassociation left).
    assert jnp.allclose(out, ref, atol=1e-4, rtol=1e-4), \
        float(jnp.max(jnp.abs(out - ref)))

    print("KERNEL_OK")
</pallas_src>

<mosaic_0001>
module attributes {stable_mosaic.version = 11 : i64} {
  func.func @_bhrf_kernel(%arg0: memref<2x4x16xf32, #tpu.memory_space<vmem>>, %arg1: memref<160x128xf32, #tpu.memory_space<vmem>>, %arg2: memref<2x64xf32, #tpu.memory_space<vmem>>) attributes {dimension_semantics = [], scalar_prefetch = 0 : i64, scratch_operands = 0 : i64, tpu.core_type = #tpu.core_type<tc>} {
    %c0 = arith.constant 0 : index
    %c0_0 = arith.constant 0 : index
    %c0_1 = arith.constant 0 : index
    %0 = vector.load %arg0[%c0, %c0_0, %c0_1] : memref<2x4x16xf32, #tpu.memory_space<vmem>>, vector<2x4x16xf32>
    %c0_2 = arith.constant 0 : index
    %c0_3 = arith.constant 0 : index
    %1 = vector.load %arg1[%c0_2, %c0_3] : memref<160x128xf32, #tpu.memory_space<vmem>>, vector<4x16xf32>
    %2 = vector.shape_cast %1 : vector<4x16xf32> to vector<1x4x16xf32>
    %3 = vector.broadcast %2 : vector<1x4x16xf32> to vector<2x4x16xf32>
    "tpu.trace_start"() <{level = 10 : i32, message = "bcs,bch->bsh"}> : () -> ()
    %cst = arith.constant dense<0.000000e+00> : vector<2x16x16xf32>
    %4 = tpu.matmul %0, %3, %cst {dimension_numbers = #tpu.dot_dimension_numbers<[1], [1], [2], [2], [0, 0, 0, 2, 1, 2], [0], [0]>} : vector<2x4x16xf32>, vector<2x4x16xf32>, vector<2x16x16xf32> -> vector<2x16x16xf32>
    "tpu.trace_stop"() : () -> ()
    %cst_4 = arith.constant dense<0xFF800000> : vector<2x16xf32>
    %5 = vector.multi_reduction <maximumf>, %4, %cst_4 [1] : vector<2x16x16xf32> to vector<2x16xf32>
    %6 = vector.shape_cast %5 : vector<2x16xf32> to vector<2x1x16xf32>
    %7 = vector.broadcast %6 : vector<2x1x16xf32> to vector<2x16x16xf32>
    %8 = arith.subf %4, %7 : vector<2x16x16xf32>
    %9 = math.exp %8 : vector<2x16x16xf32>
    %cst_5 = arith.constant dense<0.000000e+00> : vector<2x16xf32>
    %10 = vector.multi_reduction <add>, %9, %cst_5 [1] : vector<2x16x16xf32> to vector<2x16xf32>
    %11 = vector.shape_cast %10 : vector<2x16xf32> to vector<2x1x16xf32>
    %12 = vector.broadcast %11 : vector<2x1x16xf32> to vector<2x16x16xf32>
    %13 = arith.divf %9, %12 : vector<2x16x16xf32>
    "tpu.trace_start"() <{level = 10 : i32, message = "bcs,bsh->bch"}> : () -> ()
    %cst_6 = arith.constant dense<0.000000e+00> : vector<2x4x16xf32>
    %14 = tpu.matmul %0, %13, %cst_6 {dimension_numbers = #tpu.dot_dimension_numbers<[2], [1], [1], [2], [0, 0, 0, 1, 1, 2], [0], [0]>} : vector<2x4x16xf32>, vector<2x16x16xf32>, vector<2x4x16xf32> -> vector<2x4x16xf32>
    "tpu.trace_stop"() : () -> ()
    %c8 = arith.constant 8 : index
    %c0_7 = arith.constant 0 : index
    %15 = vector.load %arg1[%c8, %c0_7] : memref<160x128xf32, #tpu.memory_space<vmem>>, vector<16x16xf32>
    %16 = vector.shape_cast %15 : vector<16x16xf32> to vector<1x16x16xf32>
    %17 = vector.broadcast %16 : vector<1x16x16xf32> to vector<2x16x16xf32>
    "tpu.trace_start"() <{level = 10 : i32, message = "bch,bhk->bck"}> : () -> ()
    %cst_8 = arith.constant dense<0.000000e+00> : vector<2x4x16xf32>
    %18 = tpu.matmul %14, %17, %cst_8 {dimension_numbers = #tpu.dot_dimension_numbers<[2], [1], [1], [2], [0, 0, 0, 1, 1, 2], [0], [0]>} : vector<2x4x16xf32>, vector<2x16x16xf32>, vector<2x4x16xf32> -> vector<2x4x16xf32>
    "tpu.trace_stop"() : () -> ()
    %cst_9 = arith.constant dense<0.000000e+00> : vector<2x16xf32>
    %19 = vector.multi_reduction <add>, %18, %cst_9 [1] : vector<2x4x16xf32> to vector<2x16xf32>
    %20 = vector.shape_cast %19 : vector<2x16xf32> to vector<2x1x16xf32>
    %cst_10 = arith.constant dense<0.000000e+00> : vector<1x16xf32>
    %21 = vector.multi_reduction <add>, %20, %cst_10 [0] : vector<2x1x16xf32> to vector<1x16xf32>
    %22 = vector.shape_cast %21 : vector<1x16xf32> to vector<1x1x16xf32>
    %23 = arith.mulf %18, %18 : vector<2x4x16xf32>
    %cst_11 = arith.constant dense<0.000000e+00> : vector<2x16xf32>
    %24 = vector.multi_reduction <add>, %23, %cst_11 [1] : vector<2x4x16xf32> to vector<2x16xf32>
    %25 = vector.shape_cast %24 : vector<2x16xf32> to vector<2x1x16xf32>
    %cst_12 = arith.constant dense<0.000000e+00> : vector<1x16xf32>
    %26 = vector.multi_reduction <add>, %25, %cst_12 [0] : vector<2x1x16xf32> to vector<1x16xf32>
    %27 = vector.shape_cast %26 : vector<1x16xf32> to vector<1x1x16xf32>
    %cst_13 = arith.constant 1.250000e-01 : f32
    %28 = vector.broadcast %cst_13 : f32 to vector<1x1x16xf32>
    %29 = arith.mulf %22, %28 : vector<1x1x16xf32>
    %cst_14 = arith.constant 1.250000e-01 : f32
    %30 = vector.broadcast %cst_14 : f32 to vector<1x1x16xf32>
    %31 = arith.mulf %27, %30 : vector<1x1x16xf32>
    %32 = arith.mulf %29, %29 : vector<1x1x16xf32>
    %33 = arith.subf %31, %32 : vector<1x1x16xf32>
    %c24 = arith.constant 24 : index
    %c0_15 = arith.constant 0 : index
    %34 = vector.load %arg1[%c24, %c0_15] : memref<160x128xf32, #tpu.memory_space<vmem>>, vector<1x16xf32>
    %35 = vector.shape_cast %34 : vector<1x16xf32> to vector<1x1x16xf32>
    %c25 = arith.constant 25 : index
    %c0_16 = arith.constant 0 : index
    %36 = vector.load %arg1[%c25, %c0_16] : memref<160x128xf32, #tpu.memory_space<vmem>>, vector<1x16xf32>
    %37 = vector.shape_cast %36 : vector<1x16xf32> to vector<1x1x16xf32>
    %38 = vector.broadcast %29 : vector<1x1x16xf32> to vector<2x4x16xf32>
    %39 = arith.subf %18, %38 : vector<2x4x16xf32>
    %cst_17 = arith.constant 9.99999974E-6 : f32
    %40 = vector.broadcast %cst_17 : f32 to vector<1x1x16xf32>
    %41 = arith.addf %33, %40 : vector<1x1x16xf32>
    %42 = math.rsqrt %41 : vector<1x1x16xf32>
    %43 = vector.broadcast %42 : vector<1x1x16xf32> to vector<2x4x16xf32>
    %44 = arith.mulf %39, %43 : vector<2x4x16xf32>
    %45 = vector.broadcast %35 : vector<1x1x16xf32> to vector<2x4x16xf32>
    %46 = arith.mulf %44, %45 : vector<2x4x16xf32>
    %47 = vector.broadcast %37 : vector<1x1x16xf32> to vector<2x4x16xf32>
    %48 = arith.addf %46, %47 : vector<2x4x16xf32>
    %cst_18 = arith.constant 0.000000e+00 : f32
    %49 = vector.broadcast %cst_18 : f32 to vector<2x4x16xf32>
    %50 = arith.maximumf %48, %49 : vector<2x4x16xf32>
    %51 = arith.addf %14, %50 : vector<2x4x16xf32>
    %c32 = arith.constant 32 : index
    %c0_19 = arith.constant 0 : index
    %52 = vector.load %arg1[%c32, %c0_19] : memref<160x128xf32, #tpu.memory_space<vmem>>, vector<16x64xf32>
    %53 = vector.extract_strided_slice %51 {offsets = [0, 0, 0], sizes = [2, 1, 16], strides = [1, 1, 1]} : vector<2x4x16xf32> to vector<2x1x16xf32>
    %54 = vector.shape_cast %53 : vector<2x1x16xf32> to vector<2x16xf32>
    %cst_20 = arith.constant dense<0.000000e+00> : vector<2x64xf32>
    %55 = tpu.matmul %54, %52, %cst_20 {dimension_numbers = #tpu.dot_dimension_numbers<[1], [0], [0], [1], [0, 0, 1, 1], [], []>} : vector<2x16xf32>, vector<16x64xf32>, vector<2x64xf32> -> vector<2x64xf32>
    %c48 = arith.constant 48 : index
    %c0_21 = arith.constant 0 : index
    %56 = vector.load %arg1[%c48, %c0_21] : memref<160x128xf32, #tpu.memory_space<vmem>>, vector<16x64xf32>
    %57 = vector.extract_strided_slice %51 {offsets = [0, 1, 0], sizes = [2, 1, 16], strides = [1, 1, 1]} : vector<2x4x16xf32> to vector<2x1x16xf32>
    %58 = vector.shape_cast %57 : vector<2x1x16xf32> to vector<2x16xf32>
    %cst_22 = arith.constant dense<0.000000e+00> : vector<2x64xf32>
    %59 = tpu.matmul %58, %56, %cst_22 {dimension_numbers = #tpu.dot_dimension_numbers<[1], [0], [0], [1], [0, 0, 1, 1], [], []>} : vector<2x16xf32>, vector<16x64xf32>, vector<2x64xf32> -> vector<2x64xf32>
    %c64 = arith.constant 64 : index
    %c0_23 = arith.constant 0 : index
    %60 = vector.load %arg1[%c64, %c0_23] : memref<160x128xf32, #tpu.memory_space<vmem>>, vector<16x64xf32>
    %61 = vector.extract_strided_slice %51 {offsets = [0, 2, 0], sizes = [2, 1, 16], strides = [1, 1, 1]} : vector<2x4x16xf32> to vector<2x1x16xf32>
    %62 = vector.shape_cast %61 : vector<2x1x16xf32> to vector<2x16xf32>
    %cst_24 = arith.constant dense<0.000000e+00> : vector<2x64xf32>
    %63 = tpu.matmul %62, %60, %cst_24 {dimension_numbers = #tpu.dot_dimension_numbers<[1], [0], [0], [1], [0, 0, 1, 1], [], []>} : vector<2x16xf32>, vector<16x64xf32>, vector<2x64xf32> -> vector<2x64xf32>
    %c80 = arith.constant 80 : index
    %c0_25 = arith.constant 0 : index
    %64 = vector.load %arg1[%c80, %c0_25] : memref<160x128xf32, #tpu.memory_space<vmem>>, vector<16x64xf32>
    %65 = vector.extract_strided_slice %51 {offsets = [0, 3, 0], sizes = [2, 1, 16], strides = [1, 1, 1]} : vector<2x4x16xf32> to vector<2x1x16xf32>
    %66 = vector.shape_cast %65 : vector<2x1x16xf32> to vector<2x16xf32>
    %cst_26 = arith.constant dense<0.000000e+00> : vector<2x64xf32>
    %67 = tpu.matmul %66, %64, %cst_26 {dimension_numbers = #tpu.dot_dimension_numbers<[1], [0], [0], [1], [0, 0, 1, 1], [], []>} : vector<2x16xf32>, vector<16x64xf32>, vector<2x64xf32> -> vector<2x64xf32>
    %68 = arith.addf %55, %59 : vector<2x64xf32>
    %69 = arith.addf %63, %67 : vector<2x64xf32>
    %70 = arith.addf %68, %69 : vector<2x64xf32>
    %c96 = arith.constant 96 : index
    %c0_27 = arith.constant 0 : index
    %71 = vector.load %arg1[%c96, %c0_27] : memref<160x128xf32, #tpu.memory_space<vmem>>, vector<64x64xf32>
    %cst_28 = arith.constant dense<0.000000e+00> : vector<64xf32>
    %72 = vector.multi_reduction <add>, %70, %cst_28 [0] : vector<2x64xf32> to vector<64xf32>
    %73 = vector.shape_cast %72 : vector<64xf32> to vector<1x64xf32>
    %74 = arith.mulf %70, %70 : vector<2x64xf32>
    %cst_29 = arith.constant dense<0.000000e+00> : vector<64xf32>
    %75 = vector.multi_reduction <add>, %74, %cst_29 [0] : vector<2x64xf32> to vector<64xf32>
    %76 = vector.shape_cast %75 : vector<64xf32> to vector<1x64xf32>
    %cst_30 = arith.constant dense<0.000000e+00> : vector<1x64xf32>
    %77 = tpu.matmul %73, %71, %cst_30 {dimension_numbers = #tpu.dot_dimension_numbers<[1], [0], [0], [1], [0, 0, 1, 1], [], []>} : vector<1x64xf32>, vector<64x64xf32>, vector<1x64xf32> -> vector<1x64xf32>
    %cst_31 = arith.constant 6.250000e-02 : f32
    %78 = vector.broadcast %cst_31 : f32 to vector<1x64xf32>
    %79 = arith.mulf %77, %78 : vector<1x64xf32>
    %cst_32 = arith.constant dense<0.000000e+00> : vector<1x64xf32>
    %80 = tpu.matmul %76, %71, %cst_32 {dimension_numbers = #tpu.dot_dimension_numbers<[1], [0], [0], [1], [0, 0, 1, 1], [], []>} : vector<1x64xf32>, vector<64x64xf32>, vector<1x64xf32> -> vector<1x64xf32>
    %cst_33 = arith.constant 6.250000e-02 : f32
    %81 = vector.broadcast %cst_33 : f32 to vector<1x64xf32>
    %82 = arith.mulf %80, %81 : vector<1x64xf32>
    %83 = arith.mulf %79, %79 : vector<1x64xf32>
    %84 = arith.subf %82, %83 : vector<1x64xf32>
    %c26 = arith.constant 26 : index
    %c0_34 = arith.constant 0 : index
    %85 = vector.load %arg1[%c26, %c0_34] : memref<160x128xf32, #tpu.memory_space<vmem>>, vector<1x64xf32>
    %c27 = arith.constant 27 : index
    %c0_35 = arith.constant 0 : index
    %86 = vector.load %arg1[%c27, %c0_35] : memref<160x128xf32, #tpu.memory_space<vmem>>, vector<1x64xf32>
    %87 = vector.broadcast %79 : vector<1x64xf32> to vector<2x64xf32>
    %88 = arith.subf %70, %87 : vector<2x64xf32>
    %cst_36 = arith.constant 9.99999974E-6 : f32
    %89 = vector.broadcast %cst_36 : f32 to vector<1x64xf32>
    %90 = arith.addf %84, %89 : vector<1x64xf32>
    %91 = math.rsqrt %90 : vector<1x64xf32>
    %92 = vector.broadcast %91 : vector<1x64xf32> to vector<2x64xf32>
    %93 = arith.mulf %88, %92 : vector<2x64xf32>
    %94 = vector.broadcast %85 : vector<1x64xf32> to vector<2x64xf32>
    %95 = arith.mulf %93, %94 : vector<2x64xf32>
    %96 = vector.broadcast %86 : vector<1x64xf32> to vector<2x64xf32>
    %97 = arith.addf %95, %96 : vector<2x64xf32>
    %cst_37 = arith.constant 0.000000e+00 : f32
    %98 = vector.broadcast %cst_37 : f32 to vector<2x64xf32>
    %99 = arith.maximumf %97, %98 : vector<2x64xf32>
    %c0_38 = arith.constant 0 : index
    %c0_39 = arith.constant 0 : index
    %100 = vector.load %arg2[%c0_38, %c0_39] : memref<2x64xf32, #tpu.memory_space<vmem>>, vector<2x64xf32>
    tpu.vector_store %arg2[%c0_38, %c0_39], %99 {strides = array<i32>} : memref<2x64xf32, #tpu.memory_space<vmem>>, vector<2x64xf32>,
    return
  }
}

</mosaic_0001>

<llo_original>
// kernel: block_height_reducing_filtering.1
$region0: #{block_height_reducing_filtering.1}
  #allocation0 [shape = 'u32[]', space=smem, size = 0x4, offset = 0x4, fixed_abs, tag = 'smem constant byte address 0x4 - core index']
  #allocation1 [shape = 'u32[144,128]{1,0:T(1,128)}', space=vmem, size = 0x12000, scoped, tag = 'internal scratch']
  %s0 = inlined_call_operand.hbm [shape: f32[2,4,16], index: 0, kind: input, shape index: {}]
  %s1 = inlined_call_operand.hbm [shape: f32[160,128], index: 1, kind: input, shape index: {}]
  %s2 = inlined_call_operand.vmem [shape: f32[2,64], index: 2, kind: output, shape index: {}]
  %s3 = sld [smem:[#allocation0]]
  $region26: #{block_height_reducing_filtering.1} parent=0
    _
  %s5 = ssub.s32 1, %s3
  %s6 = scalar_select 0, %s5, %s3
  $region1: #{block_height_reducing_filtering.1} parent=0
    #allocation2 [shape = 'u8[4096]{0}', space=vmem, size = 0x1000, scoped, tag = 'input window, operand 0, single buffered']
    #allocation3 [shape = 's32[1]{0}', space=sflag, size = 0x4, scoped, tag = 'scoped memory for block_height_reducing_filtering.1']
    #allocation4 [shape = 'u8[81920]{0}', space=vmem, size = 0x14000, scoped, tag = 'input window, operand 1, single buffered']
    #allocation5 [shape = 's32[1]{0}', space=sflag, size = 0x4, scoped, tag = 'scoped memory for block_height_reducing_filtering.1']
    %7 = vsyncpa [#allocation3], 0
    %8 = vsyncpa [#allocation5], 0
    // Predicated region
    $region2: #{block_height_reducing_filtering.1} parent=1 // pred_check
      _
    $region3: #{block_height_reducing_filtering.1} parent=1 // pred_check_branch
      %10 = sbr.rel (0) target = $region5
    $region4: #{block_height_reducing_filtering.1} parent=1 // pred_region
      %s12 = ssub.s32 128, 128
      %13 = vsyncadd [#allocation3], %s12
      %s14 = sshll.u32 [#allocation2], 4
      %s15 = int_to_ptr.vmem [resolvable:$true] %s14
      %20 = dma.hbm_to_vmem [thread:$0]  %s0, 128, %s15, [#allocation3], 64, 64, 4
    $region5: #{block_height_reducing_filtering.1} parent=1 // pred_fallthru
      _
    // Predicated region
    $region6: #{block_height_reducing_filtering.1} parent=1 // pred_check
      _
    $region7: #{block_height_reducing_filtering.1} parent=1 // pred_check_branch
      %22 = sbr.rel (0) target = $region9
    $region8: #{block_height_reducing_filtering.1} parent=1 // pred_region
      %s24 = ssub.s32 2560, 2560
      %25 = vsyncadd [#allocation5], %s24
      %s26 = sshll.u32 [#allocation4], 4
      %s27 = int_to_ptr.vmem [resolvable:$true] %s26
      %32 = dma.hbm_to_vmem [thread:$0]  %s1, 2560, %s27, [#allocation5], 128, 128, 8
    $region9: #{block_height_reducing_filtering.1} parent=1 // pred_fallthru
      _
    // Predicated region
    $region10: #{block_height_reducing_filtering.1} parent=1 // pred_check
      _
    $region11: #{block_height_reducing_filtering.1} parent=1 // pred_check_branch
      %34 = sbr.rel (0) target = $region13
    $region12: #{block_height_reducing_filtering.1} parent=1 // pred_region
      %35 = dma.done [#allocation3], 128
    $region13: #{block_height_reducing_filtering.1} parent=1 // pred_fallthru
      _
    // Predicated region
    $region14: #{block_height_reducing_filtering.1} parent=1 // pred_check
      _
    $region15: #{block_height_reducing_filtering.1} parent=1 // pred_check_branch
      %37 = sbr.rel (0) target = $region17
    $region16: #{block_height_reducing_filtering.1} parent=1 // pred_region
      %38 = dma.done [#allocation5], 2560
    $region17: #{block_height_reducing_filtering.1} parent=1 // pred_fallthru
      _
    %v39 = vld [vmem:[#allocation2] sm:$0xf]
    %v40 = vld [vmem:[#allocation2 + $0x4] sm:$0xf]
    %v41 = vld [vmem:[#allocation4] sm:$0xf]
    %42 = vxpose.xlu0.b32.start [1/16] %v39, 128
    %43 = vxpose.xlu0.b32.cont [2/16] 0.0, 128
    %44 = vxpose.xlu0.b32.cont [3/16] 0.0, 128
    %45 = vxpose.xlu0.b32.cont [4/16] 0.0, 128
    %46 = vxpose.xlu0.b32.cont [5/16] 0.0, 128
    %47 = vxpose.xlu0.b32.cont [6/16] 0.0, 128
    %48 = vxpose.xlu0.b32.cont [7/16] 0.0, 128
    %49 = vxpose.xlu0.b32.cont [8/16] 0.0, 128
    %50 = vxpose.xlu0.b32.cont [9/16] 0.0, 128
    %51 = vxpose.xlu0.b32.cont [10/16] 0.0, 128
    %52 = vxpose.xlu0.b32.cont [11/16] 0.0, 128
    %53 = vxpose.xlu0.b32.cont [12/16] 0.0, 128
    %54 = vxpose.xlu0.b32.cont [13/16] 0.0, 128
    %55 = vxpose.xlu0.b32.cont [14/16] 0.0, 128
    %56 = vxpose.xlu0.b32.cont [15/16] 0.0, 128
    %57 = vxpose.xlu0.b32.end [16/16] 0.0, 128
    %v58 = vpop.trf.xlu0
    %v59 = vpop.trf.xlu0
    %v60 = vpop.trf.xlu0
    %v61 = vpop.trf.xlu0
    %v62 = vpop.trf.xlu0
    %v63 = vpop.trf.xlu0
    %v64 = vpop.trf.xlu0
    %v65 = vpop.trf.xlu0
    %v66 = vpop.trf.xlu0
    %v67 = vpop.trf.xlu0
    %v68 = vpop.trf.xlu0
    %v69 = vpop.trf.xlu0
    %v70 = vpop.trf.xlu0
    %v71 = vpop.trf.xlu0
    %v72 = vpop.trf.xlu0
    %v73 = vpop.trf.xlu0
    %vm74 = vcmask 31744
    %v76 = vsel %vm74, %v58, 0
    %v79 = vsel %vm74, %v59, 0
    %vm81 = vcmask 1043456
    %v83 = vsel %vm81, %v41, 0
    %85 = vmatprep.subr.mxu0 0.0
    %86 = vmatpush1.msra.mxu0 %v83
    %87 = vmatprep.subr.mxu0 0.0
    %88 = vmatpush1.msra.mxu0 0.0
    %89 = vmatprep.subr.mxu0 0.0
    %90 = vmatpush1.msra.mxu0 0.0
    %91 = vmatprep.subr.mxu0 0.0
    %92 = vmatpush1.msra.mxu0 0.0
    %93 = vmatprep.subr.mxu0 0.0
    %94 = vmatpush1.msra.mxu0 0.0
    %95 = vmatprep.subr.mxu0 0.0
    %96 = vmatpush1.msra.mxu0 0.0
    %97 = vmatprep.subr.mxu0 0.0
    %98 = vmatpush1.msra.mxu0 0.0
    %99 = vmatprep.subr.mxu0 0.0
    %100 = vmatpush1.msra.mxu0 0.0
    %101 = vmatprep.subr.mxu0 0.0
    %102 = vmatpush1.msra.mxu0 0.0
    %103 = vmatprep.subr.mxu0 0.0
    %104 = vmatpush1.msra.mxu0 0.0
    %105 = vmatprep.subr.mxu0 0.0
    %106 = vmatpush1.msra.mxu0 0.0
    %107 = vmatprep.subr.mxu0 0.0
    %108 = vmatpush1.msra.mxu0 0.0
    %109 = vmatprep.subr.mxu0 0.0
    %110 = vmatpush1.msra.mxu0 0.0
    %111 = vmatprep.subr.mxu0 0.0
    %112 = vmatpush1.msra.mxu0 0.0
    %113 = vmatprep.subr.mxu0 0.0
    %114 = vmatpush1.msra.mxu0 0.0
    %115 = vmatprep.subr.mxu0 0.0
    %116 = vmatpush1.msra.mxu0 0.0
    %117 = vmatprep.subr.mxu0 0.0
    %118 = vmatpush1.msra.mxu0 0.0
    %119 = vmatprep.subr.mxu0 0.0
    %120 = vmatpush1.msra.mxu0 0.0
    %121 = vmatprep.subr.mxu0 0.0
    %122 = vmatpush1.msra.mxu0 0.0
    %123 = vmatprep.subr.mxu0 0.0
    %124 = vmatpush1.msra.mxu0 0.0
    %125 = vmatprep.subr.mxu0 0.0
    %126 = vmatpush1.msra.mxu0 0.0
    %127 = vmatprep.subr.mxu0 0.0
    %128 = vmatpush1.msra.mxu0 0.0
    %129 = vmatprep.subr.mxu0 0.0
    %130 = vmatpush1.msra.mxu0 0.0
    %131 = vmatprep.subr.mxu0 0.0
    %132 = vmatpush1.msra.mxu0 0.0
    %133 = vmatprep.subr.mxu0 0.0
    %134 = vmatpush1.msra.mxu0 0.0
    %135 = vmatprep.subr.mxu0 0.0
    %136 = vmatpush1.msra.mxu0 0.0
    %137 = vmatprep.subr.mxu0 0.0
    %138 = vmatpush1.msra.mxu0 0.0
    %139 = vmatprep.subr.mxu0 0.0
    %140 = vmatpush1.msra.mxu0 0.0
    %141 = vmatprep.subr.mxu0 0.0
    %142 = vmatpush1.msra.mxu0 0.0
    %143 = vmatprep.subr.mxu0 0.0
    %144 = vmatpush1.msra.mxu0 0.0
    %145 = vmatprep.subr.mxu0 0.0
    %146 = vmatpush1.msra.mxu0 0.0
    %147 = vmatprep.subr.mxu0 0.0
    %148 = vmatpush1.msra.mxu0 0.0
    %149 = vmatprep.mubr.f32.mxu0 0.0
    %150 = vmatmul.mubr.f32.gmra.mrb[0].mxu0 %v76
    %v151 = vpop.f32.mrb[0].mxu0
    %v152 = vadd.f32 0.0, %v151
    %v153 = vpop.f32.mrb[0].mxu0
    %154 = vmatprep.mubr.f32.mxu0 0.0
    %155 = vmatmul.mubr.f32.gmra.mrb[0].mxu0 %v79
    %v156 = vpop.f32.mrb[0].mxu0
    %v157 = vadd.f32 0.0, %v156
    %v158 = vpop.f32.mrb[0].mxu0
    %159 = vdwg.mxu0
    %160 = vxpose.xlu0.b32.start [1/16] %v40, 128
    %161 = vxpose.xlu0.b32.cont [2/16] 0.0, 128
    %162 = vxpose.xlu0.b32.cont [3/16] 0.0, 128
    %163 = vxpose.xlu0.b32.cont [4/16] 0.0, 128
    %164 = vxpose.xlu0.b32.cont [5/16] 0.0, 128
    %165 = vxpose.xlu0.b32.cont [6/16] 0.0, 128
    %166 = vxpose.xlu0.b32.cont [7/16] 0.0, 128
    %167 = vxpose.xlu0.b32.cont [8/16] 0.0, 128
    %168 = vxpose.xlu0.b32.cont [9/16] 0.0, 128
    %169 = vxpose.xlu0.b32.cont [10/16] 0.0, 128
    %170 = vxpose.xlu0.b32.cont [11/16] 0.0, 128
    %171 = vxpose.xlu0.b32.cont [12/16] 0.0, 128
    %172 = vxpose.xlu0.b32.cont [13/16] 0.0, 128
    %173 = vxpose.xlu0.b32.cont [14/16] 0.0, 128
    %174 = vxpose.xlu0.b32.cont [15/16] 0.0, 128
    %175 = vxpose.xlu0.b32.end [16/16] 0.0, 128
    %v176 = vpop.trf.xlu0
    %v177 = vpop.trf.xlu0
    %v178 = vpop.trf.xlu0
    %v179 = vpop.trf.xlu0
    %v180 = vpop.trf.xlu0
    %v181 = vpop.trf.xlu0
    %v182 = vpop.trf.xlu0
    %v183 = vpop.trf.xlu0
    %v184 = vpop.trf.xlu0
    %v185 = vpop.trf.xlu0
    %v186 = vpop.trf.xlu0
    %v187 = vpop.trf.xlu0
    %v188 = vpop.trf.xlu0
    %v189 = vpop.trf.xlu0
    %v190 = vpop.trf.xlu0
    %v191 = vpop.trf.xlu0
    %v193 = vsel %vm74, %v176, 0
    %v196 = vsel %vm74, %v177, 0
    %198 = vmatprep.subr.mxu0 0.0
    %199 = vmatpush1.msra.mxu0 %v83
    %200 = vmatprep.subr.mxu0 0.0
    %201 = vmatpush1.msra.mxu0 0.0
    %202 = vmatprep.subr.mxu0 0.0
    %203 = vmatpush1.msra.mxu0 0.0
    %204 = vmatprep.subr.mxu0 0.0
    %205 = vmatpush1.msra.mxu0 0.0
    %206 = vmatprep.subr.mxu0 0.0
    %207 = vmatpush1.msra.mxu0 0.0
    %208 = vmatprep.subr.mxu0 0.0
    %209 = vmatpush1.msra.mxu0 0.0
    %210 = vmatprep.subr.mxu0 0.0
    %211 = vmatpush1.msra.mxu0 0.0
    %212 = vmatprep.subr.mxu0 0.0
    %213 = vmatpush1.msra.mxu0 0.0
    %214 = vmatprep.subr.mxu0 0.0
    %215 = vmatpush1.msra.mxu0 0.0
    %216 = vmatprep.subr.mxu0 0.0
    %217 = vmatpush1.msra.mxu0 0.0
    %218 = vmatprep.subr.mxu0 0.0
    %219 = vmatpush1.msra.mxu0 0.0
    %220 = vmatprep.subr.mxu0 0.0
    %221 = vmatpush1.msra.mxu0 0.0
    %222 = vmatprep.subr.mxu0 0.0
    %223 = vmatpush1.msra.mxu0 0.0
    %224 = vmatprep.subr.mxu0 0.0
    %225 = vmatpush1.msra.mxu0 0.0
    %226 = vmatprep.subr.mxu0 0.0
    %227 = vmatpush1.msra.mxu0 0.0
    %228 = vmatprep.subr.mxu0 0.0
    %229 = vmatpush1.msra.mxu0 0.0
    %230 = vmatprep.subr.mxu0 0.0
    %231 = vmatpush1.msra.mxu0 0.0
    %232 = vmatprep.subr.mxu0 0.0
    %233 = vmatpush1.msra.mxu0 0.0
    %234 = vmatprep.subr.mxu0 0.0
    %235 = vmatpush1.msra.mxu0 0.0
    %236 = vmatprep.subr.mxu0 0.0
    %237 = vmatpush1.msra.mxu0 0.0
    %238 = vmatprep.subr.mxu0 0.0
    %239 = vmatpush1.msra.mxu0 0.0
    %240 = vmatprep.subr.mxu0 0.0
    %241 = vmatpush1.msra.mxu0 0.0
    %242 = vmatprep.subr.mxu0 0.0
    %243 = vmatpush1.msra.mxu0 0.0
    %244 = vmatprep.subr.mxu0 0.0
    %245 = vmatpush1.msra.mxu0 0.0
    %246 = vmatprep.subr.mxu0 0.0
    %247 = vmatpush1.msra.mxu0 0.0
    %248 = vmatprep.subr.mxu0 0.0
    %249 = vmatpush1.msra.mxu0 0.0
    %250 = vmatprep.subr.mxu0 0.0
    %251 = vmatpush1.msra.mxu0 0.0
    %252 = vmatprep.subr.mxu0 0.0
    %253 = vmatpush1.msra.mxu0 0.0
    %254 = vmatprep.subr.mxu0 0.0
    %255 = vmatpush1.msra.mxu0 0.0
    %256 = vmatprep.subr.mxu0 0.0
    %257 = vmatpush1.msra.mxu0 0.0
    %258 = vmatprep.subr.mxu0 0.0
    %259 = vmatpush1.msra.mxu0 0.0
    %260 = vmatprep.subr.mxu0 0.0
    %261 = vmatpush1.msra.mxu0 0.0
    %262 = vmatprep.mubr.f32.mxu0 0.0
    %263 = vmatmul.mubr.f32.gmra.mrb[0].mxu0 %v193
    %v264 = vpop.f32.mrb[0].mxu0
    %v265 = vadd.f32 0.0, %v264
    %v266 = vpop.f32.mrb[0].mxu0
    %267 = vmatprep.mubr.f32.mxu0 0.0
    %268 = vmatmul.mubr.f32.gmra.mrb[0].mxu0 %v196
    %v269 = vpop.f32.mrb[0].mxu0
    %v270 = vadd.f32 0.0, %v269
    %v271 = vpop.f32.mrb[0].mxu0
    %272 = vdwg.mxu0
    %vm273 = vcmask 130048
    %v274 = vsel %vm273, %v152, -inf
    %v275 = vsel %vm273, %v157, -inf
    %v276 = vmax.f32 %v274, %v275
    %v277 = vrot.slane %v276, 4
    %v278 = vmax.f32 %v276, %v277
    %v279 = vrot.slane %v278, 2
    %v280 = vmax.f32 %v278, %v279
    %v281 = vrot.slane %v280, 1
    %v282 = vmax.f32 %v280, %v281
    %v283 = vsel %vm273, %v265, -inf
    %v284 = vsel %vm273, %v270, -inf
    %v285 = vmax.f32 %v283, %v284
    %v286 = vrot.slane %v285, 4
    %v287 = vmax.f32 %v285, %v286
    %v288 = vrot.slane %v287, 2
    %v289 = vmax.f32 %v287, %v288
    %v290 = vrot.slane %v289, 1
    %v291 = vmax.f32 %v289, %v290
    %v292 = vsub.f32 %v152, %v282
    %v293 = vsub.f32 %v157, %v282
    %v294 = vsub.f32 %v265, %v291
    %v295 = vsub.f32 %v270, %v291
    %v296 = vmul.f32 %v292, 1.442695
    %v297 = vpow.pop %v296
    %v298 = vmul.f32 %v293, 1.442695
    %v299 = vpow.pop %v298
    %v300 = vmul.f32 %v294, 1.442695
    %v301 = vpow.pop %v300
    %v302 = vmul.f32 %v295, 1.442695
    %v303 = vpow.pop %v302
    %v304 = vsel %vm273, %v297, 0.0
    %v305 = vsel %vm273, %v299, 0.0
    %v306 = vadd.f32 %v304, %v305
    %v307 = vrot.slane %v306, 4
    %v308 = vadd.f32 %v306, %v307
    %v309 = vrot.slane %v308, 2
    %v310 = vadd.f32 %v308, %v309
    %v311 = vrot.slane %v310, 1
    %v312 = vadd.f32 %v310, %v311
    %v313 = vsel %vm273, %v301, 0.0
    %v314 = vsel %vm273, %v303, 0.0
    %v315 = vadd.f32 %v313, %v314
    %v316 = vrot.slane %v315, 4
    %v317 = vadd.f32 %v315, %v316
    %v318 = vrot.slane %v317, 2
    %v319 = vadd.f32 %v317, %v318
    %v320 = vrot.slane %v319, 1
    %v321 = vadd.f32 %v319, %v320
    %v322 = vrcp.pop %v312
    %v323 = vmul.f32 %v297, %v322
    %v324 = vmul.f32 %v299, %v322
    %v325 = vrcp.pop %v321
    %v326 = vmul.f32 %v301, %v325
    %v327 = vmul.f32 %v303, %v325
    %v329 = vsel %vm273, %v39, 0
    %331 = vmatprep.subr.mxu0 0.0
    %332 = vmatpush1.msra.mxu0 %v323
    %333 = vmatprep.subr.mxu0 0.0
    %334 = vmatpush1.msra.mxu0 %v324
    %335 = vmatprep.subr.mxu0 0.0
    %336 = vmatpush1.msra.mxu0 0.0
    %337 = vmatprep.subr.mxu0 0.0
    %338 = vmatpush1.msra.mxu0 0.0
    %339 = vmatprep.subr.mxu0 0.0
    %340 = vmatpush1.msra.mxu0 0.0
    %341 = vmatprep.subr.mxu0 0.0
    %342 = vmatpush1.msra.mxu0 0.0
    %343 = vmatprep.subr.mxu0 0.0
    %344 = vmatpush1.msra.mxu0 0.0
    %345 = vmatprep.subr.mxu0 0.0
    %346 = vmatpush1.msra.mxu0 0.0
    %347 = vmatprep.subr.mxu0 0.0
    %348 = vmatpush1.msra.mxu0 0.0
    %349 = vmatprep.subr.mxu0 0.0
    %350 = vmatpush1.msra.mxu0 0.0
    %351 = vmatprep.subr.mxu0 0.0
    %352 = vmatpush1.msra.mxu0 0.0
    %353 = vmatprep.subr.mxu0 0.0
    %354 = vmatpush1.msra.mxu0 0.0
    %355 = vmatprep.subr.mxu0 0.0
    %356 = vmatpush1.msra.mxu0 0.0
    %357 = vmatprep.subr.mxu0 0.0
    %358 = vmatpush1.msra.mxu0 0.0
    %359 = vmatprep.subr.mxu0 0.0
    %360 = vmatpush1.msra.mxu0 0.0
    %361 = vmatprep.subr.mxu0 0.0
    %362 = vmatpush1.msra.mxu0 0.0
    %363 = vmatprep.subr.mxu0 0.0
    %364 = vmatpush1.msra.mxu0 0.0
    %365 = vmatprep.subr.mxu0 0.0
    %366 = vmatpush1.msra.mxu0 0.0
    %367 = vmatprep.subr.mxu0 0.0
    %368 = vmatpush1.msra.mxu0 0.0
    %369 = vmatprep.subr.mxu0 0.0
    %370 = vmatpush1.msra.mxu0 0.0
    %371 = vmatprep.subr.mxu0 0.0
    %372 = vmatpush1.msra.mxu0 0.0
    %373 = vmatprep.subr.mxu0 0.0
    %374 = vmatpush1.msra.mxu0 0.0
    %375 = vmatprep.subr.mxu0 0.0
    %376 = vmatpush1.msra.mxu0 0.0
    %377 = vmatprep.subr.mxu0 0.0
    %378 = vmatpush1.msra.mxu0 0.0
    %379 = vmatprep.subr.mxu0 0.0
    %380 = vmatpush1.msra.mxu0 0.0
    %381 = vmatprep.subr.mxu0 0.0
    %382 = vmatpush1.msra.mxu0 0.0
    %383 = vmatprep.subr.mxu0 0.0
    %384 = vmatpush1.msra.mxu0 0.0
    %385 = vmatprep.subr.mxu0 0.0
    %386 = vmatpush1.msra.mxu0 0.0
    %387 = vmatprep.subr.mxu0 0.0
    %388 = vmatpush1.msra.mxu0 0.0
    %389 = vmatprep.subr.mxu0 0.0
    %390 = vmatpush1.msra.mxu0 0.0
    %391 = vmatprep.subr.mxu0 0.0
    %392 = vmatpush1.msra.mxu0 0.0
    %393 = vmatprep.subr.mxu0 0.0
    %394 = vmatpush1.msra.mxu0 0.0
    %395 = vmatprep.mubr.f32.mxu0 0.0
    %396 = vmatmul.mubr.f32.gmra.mrb[0].mxu0 %v329
    %v397 = vpop.f32.mrb[0].mxu0
    %v398 = vadd.f32 0.0, %v397
    %v399 = vpop.f32.mrb[0].mxu0
    %400 = vdwg.mxu0
    %v402 = vsel %vm273, %v40, 0
    %404 = vmatprep.subr.mxu0 0.0
    %405 = vmatpush1.msra.mxu0 %v326
    %406 = vmatprep.subr.mxu0 0.0
    %407 = vmatpush1.msra.mxu0 %v327
    %408 = vmatprep.subr.mxu0 0.0
    %409 = vmatpush1.msra.mxu0 0.0
    %410 = vmatprep.subr.mxu0 0.0
    %411 = vmatpush1.msra.mxu0 0.0
    %412 = vmatprep.subr.mxu0 0.0
    %413 = vmatpush1.msra.mxu0 0.0
    %414 = vmatprep.subr.mxu0 0.0
    %415 = vmatpush1.msra.mxu0 0.0
    %416 = vmatprep.subr.mxu0 0.0
    %417 = vmatpush1.msra.mxu0 0.0
    %418 = vmatprep.subr.mxu0 0.0
    %419 = vmatpush1.msra.mxu0 0.0
    %420 = vmatprep.subr.mxu0 0.0
    %421 = vmatpush1.msra.mxu0 0.0
    %422 = vmatprep.subr.mxu0 0.0
    %423 = vmatpush1.msra.mxu0 0.0
    %424 = vmatprep.subr.mxu0 0.0
    %425 = vmatpush1.msra.mxu0 0.0
    %426 = vmatprep.subr.mxu0 0.0
    %427 = vmatpush1.msra.mxu0 0.0
    %428 = vmatprep.subr.mxu0 0.0
    %429 = vmatpush1.msra.mxu0 0.0
    %430 = vmatprep.subr.mxu0 0.0
    %431 = vmatpush1.msra.mxu0 0.0
    %432 = vmatprep.subr.mxu0 0.0
    %433 = vmatpush1.msra.mxu0 0.0
    %434 = vmatprep.subr.mxu0 0.0
    %435 = vmatpush1.msra.mxu0 0.0
    %436 = vmatprep.subr.mxu0 0.0
    %437 = vmatpush1.msra.mxu0 0.0
    %438 = vmatprep.subr.mxu0 0.0
    %439 = vmatpush1.msra.mxu0 0.0
    %440 = vmatprep.subr.mxu0 0.0
    %441 = vmatpush1.msra.mxu0 0.0
    %442 = vmatprep.subr.mxu0 0.0
    %443 = vmatpush1.msra.mxu0 0.0
    %444 = vmatprep.subr.mxu0 0.0
    %445 = vmatpush1.msra.mxu0 0.0
    %446 = vmatprep.subr.mxu0 0.0
    %447 = vmatpush1.msra.mxu0 0.0
    %448 = vmatprep.subr.mxu0 0.0
    %449 = vmatpush1.msra.mxu0 0.0
    %450 = vmatprep.subr.mxu0 0.0
    %451 = vmatpush1.msra.mxu0 0.0
    %452 = vmatprep.subr.mxu0 0.0
    %453 = vmatpush1.msra.mxu0 0.0
    %454 = vmatprep.subr.mxu0 0.0
    %455 = vmatpush1.msra.mxu0 0.0
    %456 = vmatprep.subr.mxu0 0.0
    %457 = vmatpush1.msra.mxu0 0.0
    %458 = vmatprep.subr.mxu0 0.0
    %459 = vmatpush1.msra.mxu0 0.0
    %460 = vmatprep.subr.mxu0 0.0
    %461 = vmatpush1.msra.mxu0 0.0
    %462 = vmatprep.subr.mxu0 0.0
    %463 = vmatpush1.msra.mxu0 0.0
    %464 = vmatprep.subr.mxu0 0.0
    %465 = vmatpush1.msra.mxu0 0.0
    %466 = vmatprep.subr.mxu0 0.0
    %467 = vmatpush1.msra.mxu0 0.0
    %468 = vmatprep.mubr.f32.mxu0 0.0
    %469 = vmatmul.mubr.f32.gmra.mrb[0].mxu0 %v402
    %v470 = vpop.f32.mrb[0].mxu0
    %v471 = vadd.f32 0.0, %v470
    %v472 = vpop.f32.mrb[0].mxu0
    %473 = vdwg.mxu0
    %v474 = vld [vmem:[#allocation4 + $0x8] sm:$0xff]
    %v475 = vld [vmem:[#allocation4 + $0x10] sm:$0xff]
    %v477 = vsel %vm273, %v398, 0
    %479 = vmatprep.subr.mxu0 0.0
    %480 = vmatpush1.msra.mxu0 %v474
    %481 = vmatprep.subr.mxu0 0.0
    %482 = vmatpush1.msra.mxu0 %v475
    %483 = vmatprep.subr.mxu0 0.0
    %484 = vmatpush1.msra.mxu0 0.0
    %485 = vmatprep.subr.mxu0 0.0
    %486 = vmatpush1.msra.mxu0 0.0
    %487 = vmatprep.subr.mxu0 0.0
    %488 = vmatpush1.msra.mxu0 0.0
    %489 = vmatprep.subr.mxu0 0.0
    %490 = vmatpush1.msra.mxu0 0.0
    %491 = vmatprep.subr.mxu0 0.0
    %492 = vmatpush1.msra.mxu0 0.0
    %493 = vmatprep.subr.mxu0 0.0
    %494 = vmatpush1.msra.mxu0 0.0
    %495 = vmatprep.subr.mxu0 0.0
    %496 = vmatpush1.msra.mxu0 0.0
    %497 = vmatprep.subr.mxu0 0.0
    %498 = vmatpush1.msra.mxu0 0.0
    %499 = vmatprep.subr.mxu0 0.0
    %500 = vmatpush1.msra.mxu0 0.0
    %501 = vmatprep.subr.mxu0 0.0
    %502 = vmatpush1.msra.mxu0 0.0
    %503 = vmatprep.subr.mxu0 0.0
    %504 = vmatpush1.msra.mxu0 0.0
    %505 = vmatprep.subr.mxu0 0.0
    %506 = vmatpush1.msra.mxu0 0.0
    %507 = vmatprep.subr.mxu0 0.0
    %508 = vmatpush1.msra.mxu0 0.0
    %509 = vmatprep.subr.mxu0 0.0
    %510 = vmatpush1.msra.mxu0 0.0
    %511 = vmatprep.subr.mxu0 0.0
    %512 = vmatpush1.msra.mxu0 0.0
    %513 = vmatprep.subr.mxu0 0.0
    %514 = vmatpush1.msra.mxu0 0.0
    %515 = vmatprep.subr.mxu0 0.0
    %516 = vmatpush1.msra.mxu0 0.0
    %517 = vmatprep.subr.mxu0 0.0
    %518 = vmatpush1.msra.mxu0 0.0
    %519 = vmatprep.subr.mxu0 0.0
    %520 = vmatpush1.msra.mxu0 0.0
    %521 = vmatprep.subr.mxu0 0.0
    %522 = vmatpush1.msra.mxu0 0.0
    %523 = vmatprep.subr.mxu0 0.0
    %524 = vmatpush1.msra.mxu0 0.0
    %525 = vmatprep.subr.mxu0 0.0
    %526 = vmatpush1.msra.mxu0 0.0
    %527 = vmatprep.subr.mxu0 0.0
    %528 = vmatpush1.msra.mxu0 0.0
    %529 = vmatprep.subr.mxu0 0.0
    %530 = vmatpush1.msra.mxu0 0.0
    %531 = vmatprep.subr.mxu0 0.0
    %532 = vmatpush1.msra.mxu0 0.0
    %533 = vmatprep.subr.mxu0 0.0
    %534 = vmatpush1.msra.mxu0 0.0
    %535 = vmatprep.subr.mxu0 0.0
    %536 = vmatpush1.msra.mxu0 0.0
    %537 = vmatprep.subr.mxu0 0.0
    %538 = vmatpush1.msra.mxu0 0.0
    %539 = vmatprep.subr.mxu0 0.0
    %540 = vmatpush1.msra.mxu0 0.0
    %541 = vmatprep.subr.mxu0 0.0
    %542 = vmatpush1.msra.mxu0 0.0
    %543 = vmatprep.mubr.f32.mxu0 0.0
    %544 = vmatmul.mubr.f32.gmra.mrb[0].mxu0 %v477
    %v545 = vpop.f32.mrb[0].mxu0
    %v546 = vadd.f32 0.0, %v545
    %v547 = vpop.f32.mrb[0].mxu0
    %548 = vdwg.mxu0
    %v550 = vsel %vm273, %v471, 0
    %552 = vmatprep.subr.mxu0 0.0
    %553 = vmatpush1.msra.mxu0 %v474
    %554 = vmatprep.subr.mxu0 0.0
    %555 = vmatpush1.msra.mxu0 %v475
    %556 = vmatprep.subr.mxu0 0.0
    %557 = vmatpush1.msra.mxu0 0.0
    %558 = vmatprep.subr.mxu0 0.0
    %559 = vmatpush1.msra.mxu0 0.0
    %560 = vmatprep.subr.mxu0 0.0
    %561 = vmatpush1.msra.mxu0 0.0
    %562 = vmatprep.subr.mxu0 0.0
    %563 = vmatpush1.msra.mxu0 0.0
    %564 = vmatprep.subr.mxu0 0.0
    %565 = vmatpush1.msra.mxu0 0.0
    %566 = vmatprep.subr.mxu0 0.0
    %567 = vmatpush1.msra.mxu0 0.0
    %568 = vmatprep.subr.mxu0 0.0
    %569 = vmatpush1.msra.mxu0 0.0
    %570 = vmatprep.subr.mxu0 0.0
    %571 = vmatpush1.msra.mxu0 0.0
    %572 = vmatprep.subr.mxu0 0.0
    %573 = vmatpush1.msra.mxu0 0.0
    %574 = vmatprep.subr.mxu0 0.0
    %575 = vmatpush1.msra.mxu0 0.0
    %576 = vmatprep.subr.mxu0 0.0
    %577 = vmatpush1.msra.mxu0 0.0
    %578 = vmatprep.subr.mxu0 0.0
    %579 = vmatpush1.msra.mxu0 0.0
    %580 = vmatprep.subr.mxu0 0.0
    %581 = vmatpush1.msra.mxu0 0.0
    %582 = vmatprep.subr.mxu0 0.0
    %583 = vmatpush1.msra.mxu0 0.0
    %584 = vmatprep.subr.mxu0 0.0
    %585 = vmatpush1.msra.mxu0 0.0
    %586 = vmatprep.subr.mxu0 0.0
    %587 = vmatpush1.msra.mxu0 0.0
    %588 = vmatprep.subr.mxu0 0.0
    %589 = vmatpush1.msra.mxu0 0.0
    %590 = vmatprep.subr.mxu0 0.0
    %591 = vmatpush1.msra.mxu0 0.0
    %592 = vmatprep.subr.mxu0 0.0
    %593 = vmatpush1.msra.mxu0 0.0
    %594 = vmatprep.subr.mxu0 0.0
    %595 = vmatpush1.msra.mxu0 0.0
    %596 = vmatprep.subr.mxu0 0.0
    %597 = vmatpush1.msra.mxu0 0.0
    %598 = vmatprep.subr.mxu0 0.0
    %599 = vmatpush1.msra.mxu0 0.0
    %600 = vmatprep.subr.mxu0 0.0
    %601 = vmatpush1.msra.mxu0 0.0
    %602 = vmatprep.subr.mxu0 0.0
    %603 = vmatpush1.msra.mxu0 0.0
    %604 = vmatprep.subr.mxu0 0.0
    %605 = vmatpush1.msra.mxu0 0.0
    %606 = vmatprep.subr.mxu0 0.0
    %607 = vmatpush1.msra.mxu0 0.0
    %608 = vmatprep.subr.mxu0 0.0
    %609 = vmatpush1.msra.mxu0 0.0
    %610 = vmatprep.subr.mxu0 0.0
    %611 = vmatpush1.msra.mxu0 0.0
    %612 = vmatprep.subr.mxu0 0.0
    %613 = vmatpush1.msra.mxu0 0.0
    %614 = vmatprep.subr.mxu0 0.0
    %615 = vmatpush1.msra.mxu0 0.0
    %616 = vmatprep.mubr.f32.mxu0 0.0
    %617 = vmatmul.mubr.f32.gmra.mrb[0].mxu0 %v550
    %v618 = vpop.f32.mrb[0].mxu0
    %v619 = vadd.f32 0.0, %v618
    %v620 = vpop.f32.mrb[0].mxu0
    %621 = vdwg.mxu0
    %vm622 = vcmask 125952
    %v623 = vsel %vm622, %v546, 0.0
    %v624 = vrot.slane %v623, 4
    %v625 = vadd.f32 %v623, %v624
    %v626 = vrot.slane %v625, 2
    %v627 = vadd.f32 %v625, %v626
    %v628 = vrot.slane %v627, 1
    %v629 = vadd.f32 %v627, %v628
    %v630 = vsel %vm622, %v619, 0.0
    %v631 = vrot.slane %v630, 4
    %v632 = vadd.f32 %v630, %v631
    %v633 = vrot.slane %v632, 2
    %v634 = vadd.f32 %v632, %v633
    %v635 = vrot.slane %v634, 1
    %v636 = vadd.f32 %v634, %v635
    %v637 = vsel %vm273, %v629, 0.0
    %v638 = vsel %vm273, %v636, 0.0
    %v639 = vadd.f32 %v637, %v638
    %v640 = vmul.f32 %v546, %v546
    %v641 = vmul.f32 %v619, %v619
    %v642 = vsel %vm622, %v640, 0.0
    %v643 = vrot.slane %v642, 4
    %v644 = vadd.f32 %v642, %v643
    %v645 = vrot.slane %v644, 2
    %v646 = vadd.f32 %v644, %v645
    %v647 = vrot.slane %v646, 1
    %v648 = vadd.f32 %v646, %v647
    %v649 = vsel %vm622, %v641, 0.0
    %v650 = vrot.slane %v649, 4
    %v651 = vadd.f32 %v649, %v650
    %v652 = vrot.slane %v651, 2
    %v653 = vadd.f32 %v651, %v652
    %v654 = vrot.slane %v653, 1
    %v655 = vadd.f32 %v653, %v654
    %v656 = vsel %vm273, %v648, 0.0
    %v657 = vsel %vm273, %v655, 0.0
    %v658 = vadd.f32 %v656, %v657
    %v659 = vmul.f32 %v639, 0.125
    %v660 = vmul.f32 %v658, 0.125
    %v661 = vmul.f32 %v659, %v659
    %v662 = vsub.f32 %v660, %v661
    %v663 = vld [vmem:[#allocation4 + $0x18] sm:$0x1]
    %v664 = vld [vmem:[#allocation4 + $0x19] sm:$0x1]
    %v665 = vsub.f32 %v546, %v659
    %v666 = vsub.f32 %v619, %v659
    %v667 = vadd.f32 %v662, 1e-05
    %v668 = vrsqrt.pop %v667
    %v669 = vmul.f32 %v665, %v668
    %v670 = vmul.f32 %v666, %v668
    %v671 = vlaneseq
    %v672 = vshrl.u32 %v671, 7
    %v673 = vsub.s32 0, %v672
    %v674 = vrot.slane %v663, %v673
    %v675 = vmul.f32 %v669, %v674
    %v676 = vmul.f32 %v670, %v674
    %v677 = vlaneseq
    %v678 = vshrl.u32 %v677, 7
    %v679 = vsub.s32 0, %v678
    %v680 = vrot.slane %v664, %v679
    %v681 = vadd.f32 %v675, %v680
    %v682 = vadd.f32 %v676, %v680
    %v683 = vmax.f32 %v681, 0.0
    %v684 = vmax.f32 %v682, 0.0
    %v685 = vadd.f32 %v398, %v683
    %v686 = vadd.f32 %v471, %v684
    %v687 = vld [vmem:[#allocation4 + $0x20] sm:$0xff]
    %v688 = vld [vmem:[#allocation4 + $0x28] sm:$0xff]
    %v689 = vld [vmem:[#allocation4 + $0x30] sm:$0xff]
    %v690 = vld [vmem:[#allocation4 + $0x38] sm:$0xff]
    %v693 = vrot.slane %v685, 1
    %vm694 = vcmask 1041409
    %v695 = vsel %vm694, %v686, %v693
    %v696 = vsel %vm273, %v695, 0
    %698 = vmatprep.subr.mxu0 0.0
    %699 = vmatpush1.msra.mxu0 %v689
    %700 = vmatprep.subr.mxu0 0.0
    %701 = vmatpush1.msra.mxu0 %v690
    %702 = vmatprep.subr.mxu0 0.0
    %703 = vmatpush1.msra.mxu0 0.0
    %704 = vmatprep.subr.mxu0 0.0
    %705 = vmatpush1.msra.mxu0 0.0
    %706 = vmatprep.subr.mxu0 0.0
    %707 = vmatpush1.msra.mxu0 0.0
    %708 = vmatprep.subr.mxu0 0.0
    %709 = vmatpush1.msra.mxu0 0.0
    %710 = vmatprep.subr.mxu0 0.0
    %711 = vmatpush1.msra.mxu0 0.0
    %712 = vmatprep.subr.mxu0 0.0
    %713 = vmatpush1.msra.mxu0 0.0
    %714 = vmatprep.subr.mxu0 0.0
    %715 = vmatpush1.msra.mxu0 0.0
    %716 = vmatprep.subr.mxu0 0.0
    %717 = vmatpush1.msra.mxu0 0.0
    %718 = vmatprep.subr.mxu0 0.0
    %719 = vmatpush1.msra.mxu0 0.0
    %720 = vmatprep.subr.mxu0 0.0
    %721 = vmatpush1.msra.mxu0 0.0
    %722 = vmatprep.subr.mxu0 0.0
    %723 = vmatpush1.msra.mxu0 0.0
    %724 = vmatprep.subr.mxu0 0.0
    %725 = vmatpush1.msra.mxu0 0.0
    %726 = vmatprep.subr.mxu0 0.0
    %727 = vmatpush1.msra.mxu0 0.0
    %728 = vmatprep.subr.mxu0 0.0
    %729 = vmatpush1.msra.mxu0 0.0
    %730 = vmatprep.subr.mxu0 0.0
    %731 = vmatpush1.msra.mxu0 0.0
    %732 = vmatprep.subr.mxu0 0.0
    %733 = vmatpush1.msra.mxu0 0.0
    %734 = vmatprep.subr.mxu0 0.0
    %735 = vmatpush1.msra.mxu0 0.0
    %736 = vmatprep.subr.mxu0 0.0
    %737 = vmatpush1.msra.mxu0 0.0
    %738 = vmatprep.subr.mxu0 0.0
    %739 = vmatpush1.msra.mxu0 0.0
    %740 = vmatprep.subr.mxu0 0.0
    %741 = vmatpush1.msra.mxu0 0.0
    %742 = vmatprep.subr.mxu0 0.0
    %743 = vmatpush1.msra.mxu0 0.0
    %744 = vmatprep.subr.mxu0 0.0
    %745 = vmatpush1.msra.mxu0 0.0
    %746 = vmatprep.subr.mxu0 0.0
    %747 = vmatpush1.msra.mxu0 0.0
    %748 = vmatprep.subr.mxu0 0.0
    %749 = vmatpush1.msra.mxu0 0.0
    %750 = vmatprep.subr.mxu0 0.0
    %751 = vmatpush1.msra.mxu0 0.0
    %752 = vmatprep.subr.mxu0 0.0
    %753 = vmatpush1.msra.mxu0 0.0
    %754 = vmatprep.subr.mxu0 0.0
    %755 = vmatpush1.msra.mxu0 0.0
    %756 = vmatprep.subr.mxu0 0.0
    %757 = vmatpush1.msra.mxu0 0.0
    %758 = vmatprep.subr.mxu0 0.0
    %759 = vmatpush1.msra.mxu0 0.0
    %760 = vmatprep.subr.mxu0 0.0
    %761 = vmatpush1.msra.mxu0 0.0
    %762 = vmatprep.mubr.f32.mxu0 0.0
    %763 = vmatmul.mubr.f32.gmra.mrb[0].mxu0 %v696
    %v764 = vpop.f32.mrb[0].mxu0
    %v765 = vadd.f32 0.0, %v764
    %v766 = vpop.f32.mrb[0].mxu0
    %767 = vdwg.mxu0
    %v768 = vld [vmem:[#allocation4 + $0x40] sm:$0xff]
    %v769 = vld [vmem:[#allocation4 + $0x48] sm:$0xff]
    %v770 = vld [vmem:[#allocation4 + $0x50] sm:$0xff]
    %v771 = vld [vmem:[#allocation4 + $0x58] sm:$0xff]
    %v772 = vrot.slane %v685, 3
    %v773 = vrot.slane %v686, 2
    %v774 = vsel %vm694, %v773, %v772
    %v775 = vsel %vm273, %v774, 0
    %777 = vmatprep.subr.mxu0 0.0
    %778 = vmatpush1.msra.mxu0 %v770
    %779 = vmatprep.subr.mxu0 0.0
    %780 = vmatpush1.msra.mxu0 %v771
    %781 = vmatprep.subr.mxu0 0.0
    %782 = vmatpush1.msra.mxu0 0.0
    %783 = vmatprep.subr.mxu0 0.0
    %784 = vmatpush1.msra.mxu0 0.0
    %785 = vmatprep.subr.mxu0 0.0
    %786 = vmatpush1.msra.mxu0 0.0
    %787 = vmatprep.subr.mxu0 0.0
    %788 = vmatpush1.msra.mxu0 0.0
    %789 = vmatprep.subr.mxu0 0.0
    %790 = vmatpush1.msra.mxu0 0.0
    %791 = vmatprep.subr.mxu0 0.0
    %792 = vmatpush1.msra.mxu0 0.0
    %793 = vmatprep.subr.mxu0 0.0
    %794 = vmatpush1.msra.mxu0 0.0
    %795 = vmatprep.subr.mxu0 0.0
    %796 = vmatpush1.msra.mxu0 0.0
    %797 = vmatprep.subr.mxu0 0.0
    %798 = vmatpush1.msra.mxu0 0.0
    %799 = vmatprep.subr.mxu0 0.0
    %800 = vmatpush1.msra.mxu0 0.0
    %801 = vmatprep.subr.mxu0 0.0
    %802 = vmatpush1.msra.mxu0 0.0
    %803 = vmatprep.subr.mxu0 0.0
    %804 = vmatpush1.msra.mxu0 0.0
    %805 = vmatprep.subr.mxu0 0.0
    %806 = vmatpush1.msra.mxu0 0.0
    %807 = vmatprep.subr.mxu0 0.0
    %808 = vmatpush1.msra.mxu0 0.0
    %809 = vmatprep.subr.mxu0 0.0
    %810 = vmatpush1.msra.mxu0 0.0
    %811 = vmatprep.subr.mxu0 0.0
    %812 = vmatpush1.msra.mxu0 0.0
    %813 = vmatprep.subr.mxu0 0.0
    %814 = vmatpush1.msra.mxu0 0.0
    %815 = vmatprep.subr.mxu0 0.0
    %816 = vmatpush1.msra.mxu0 0.0
    %817 = vmatprep.subr.mxu0 0.0
    %818 = vmatpush1.msra.mxu0 0.0
    %819 = vmatprep.subr.mxu0 0.0
    %820 = vmatpush1.msra.mxu0 0.0
    %821 = vmatprep.subr.mxu0 0.0
    %822 = vmatpush1.msra.mxu0 0.0
    %823 = vmatprep.subr.mxu0 0.0
    %824 = vmatpush1.msra.mxu0 0.0
    %825 = vmatprep.subr.mxu0 0.0
    %826 = vmatpush1.msra.mxu0 0.0
    %827 = vmatprep.subr.mxu0 0.0
    %828 = vmatpush1.msra.mxu0 0.0
    %829 = vmatprep.subr.mxu0 0.0
    %830 = vmatpush1.msra.mxu0 0.0
    %831 = vmatprep.subr.mxu0 0.0
    %832 = vmatpush1.msra.mxu0 0.0
    %833 = vmatprep.subr.mxu0 0.0
    %834 = vmatpush1.msra.mxu0 0.0
    %835 = vmatprep.subr.mxu0 0.0
    %836 = vmatpush1.msra.mxu0 0.0
    %837 = vmatprep.subr.mxu0 0.0
    %838 = vmatpush1.msra.mxu0 0.0
    %839 = vmatprep.subr.mxu0 0.0
    %840 = vmatpush1.msra.mxu0 0.0
    %841 = vmatprep.mubr.f32.mxu0 0.0
    %842 = vmatmul.mubr.f32.gmra.mrb[0].mxu0 %v775
    %v843 = vpop.f32.mrb[0].mxu0
    %v844 = vadd.f32 0.0, %v843
    %v845 = vpop.f32.mrb[0].mxu0
    %846 = vdwg.mxu0
    %v847 = vrot.slane %v686, 7
    %v848 = vsel %vm694, %v847, %v685
    %v849 = vsel %vm273, %v848, 0
    %851 = vmatprep.subr.mxu0 0.0
    %852 = vmatpush1.msra.mxu0 %v687
    %853 = vmatprep.subr.mxu0 0.0
    %854 = vmatpush1.msra.mxu0 %v688
    %855 = vmatprep.subr.mxu0 0.0
    %856 = vmatpush1.msra.mxu0 0.0
    %857 = vmatprep.subr.mxu0 0.0
    %858 = vmatpush1.msra.mxu0 0.0
    %859 = vmatprep.subr.mxu0 0.0
    %860 = vmatpush1.msra.mxu0 0.0
    %861 = vmatprep.subr.mxu0 0.0
    %862 = vmatpush1.msra.mxu0 0.0
    %863 = vmatprep.subr.mxu0 0.0
    %864 = vmatpush1.msra.mxu0 0.0
    %865 = vmatprep.subr.mxu0 0.0
    %866 = vmatpush1.msra.mxu0 0.0
    %867 = vmatprep.subr.mxu0 0.0
    %868 = vmatpush1.msra.mxu0 0.0
    %869 = vmatprep.subr.mxu0 0.0
    %870 = vmatpush1.msra.mxu0 0.0
    %871 = vmatprep.subr.mxu0 0.0
    %872 = vmatpush1.msra.mxu0 0.0
    %873 = vmatprep.subr.mxu0 0.0
    %874 = vmatpush1.msra.mxu0 0.0
    %875 = vmatprep.subr.mxu0 0.0
    %876 = vmatpush1.msra.mxu0 0.0
    %877 = vmatprep.subr.mxu0 0.0
    %878 = vmatpush1.msra.mxu0 0.0
    %879 = vmatprep.subr.mxu0 0.0
    %880 = vmatpush1.msra.mxu0 0.0
    %881 = vmatprep.subr.mxu0 0.0
    %882 = vmatpush1.msra.mxu0 0.0
    %883 = vmatprep.subr.mxu0 0.0
    %884 = vmatpush1.msra.mxu0 0.0
    %885 = vmatprep.subr.mxu0 0.0
    %886 = vmatpush1.msra.mxu0 0.0
    %887 = vmatprep.subr.mxu0 0.0
    %888 = vmatpush1.msra.mxu0 0.0
    %889 = vmatprep.subr.mxu0 0.0
    %890 = vmatpush1.msra.mxu0 0.0
    %891 = vmatprep.subr.mxu0 0.0
    %892 = vmatpush1.msra.mxu0 0.0
    %893 = vmatprep.subr.mxu0 0.0
    %894 = vmatpush1.msra.mxu0 0.0
    %895 = vmatprep.subr.mxu0 0.0
    %896 = vmatpush1.msra.mxu0 0.0
    %897 = vmatprep.subr.mxu0 0.0
    %898 = vmatpush1.msra.mxu0 0.0
    %899 = vmatprep.subr.mxu0 0.0
    %900 = vmatpush1.msra.mxu0 0.0
    %901 = vmatprep.subr.mxu0 0.0
    %902 = vmatpush1.msra.mxu0 0.0
    %903 = vmatprep.subr.mxu0 0.0
    %904 = vmatpush1.msra.mxu0 0.0
    %905 = vmatprep.subr.mxu0 0.0
    %906 = vmatpush1.msra.mxu0 0.0
    %907 = vmatprep.subr.mxu0 0.0
    %908 = vmatpush1.msra.mxu0 0.0
    %909 = vmatprep.subr.mxu0 0.0
    %910 = vmatpush1.msra.mxu0 0.0
    %911 = vmatprep.subr.mxu0 0.0
    %912 = vmatpush1.msra.mxu0 0.0
    %913 = vmatprep.subr.mxu0 0.0
    %914 = vmatpush1.msra.mxu0 0.0
    %915 = vmatprep.mubr.f32.mxu0 0.0
    %916 = vmatmul.mubr.f32.gmra.mrb[0].mxu0 %v849
    %v917 = vpop.f32.mrb[0].mxu0
    %v918 = vadd.f32 %v765, %v917
    %v919 = vpop.f32.mrb[0].mxu0
    %920 = vdwg.mxu0
    %v921 = vrot.slane %v685, 2
    %v922 = vrot.slane %v686, 1
    %v923 = vsel %vm694, %v922, %v921
    %v924 = vsel %vm273, %v923, 0
    %926 = vmatprep.subr.mxu0 0.0
    %927 = vmatpush1.msra.mxu0 %v768
    %928 = vmatprep.subr.mxu0 0.0
    %929 = vmatpush1.msra.mxu0 %v769
    %930 = vmatprep.subr.mxu0 0.0
    %931 = vmatpush1.msra.mxu0 0.0
    %932 = vmatprep.subr.mxu0 0.0
    %933 = vmatpush1.msra.mxu0 0.0
    %934 = vmatprep.subr.mxu0 0.0
    %935 = vmatpush1.msra.mxu0 0.0
    %936 = vmatprep.subr.mxu0 0.0
    %937 = vmatpush1.msra.mxu0 0.0
    %938 = vmatprep.subr.mxu0 0.0
    %939 = vmatpush1.msra.mxu0 0.0
    %940 = vmatprep.subr.mxu0 0.0
    %941 = vmatpush1.msra.mxu0 0.0
    %942 = vmatprep.subr.mxu0 0.0
    %943 = vmatpush1.msra.mxu0 0.0
    %944 = vmatprep.subr.mxu0 0.0
    %945 = vmatpush1.msra.mxu0 0.0
    %946 = vmatprep.subr.mxu0 0.0
    %947 = vmatpush1.msra.mxu0 0.0
    %948 = vmatprep.subr.mxu0 0.0
    %949 = vmatpush1.msra.mxu0 0.0
    %950 = vmatprep.subr.mxu0 0.0
    %951 = vmatpush1.msra.mxu0 0.0
    %952 = vmatprep.subr.mxu0 0.0
    %953 = vmatpush1.msra.mxu0 0.0
    %954 = vmatprep.subr.mxu0 0.0
    %955 = vmatpush1.msra.mxu0 0.0
    %956 = vmatprep.subr.mxu0 0.0
    %957 = vmatpush1.msra.mxu0 0.0
    %958 = vmatprep.subr.mxu0 0.0
    %959 = vmatpush1.msra.mxu0 0.0
    %960 = vmatprep.subr.mxu0 0.0
    %961 = vmatpush1.msra.mxu0 0.0
    %962 = vmatprep.subr.mxu0 0.0
    %963 = vmatpush1.msra.mxu0 0.0
    %964 = vmatprep.subr.mxu0 0.0
    %965 = vmatpush1.msra.mxu0 0.0
    %966 = vmatprep.subr.mxu0 0.0
    %967 = vmatpush1.msra.mxu0 0.0
    %968 = vmatprep.subr.mxu0 0.0
    %969 = vmatpush1.msra.mxu0 0.0
    %970 = vmatprep.subr.mxu0 0.0
    %971 = vmatpush1.msra.mxu0 0.0
    %972 = vmatprep.subr.mxu0 0.0
    %973 = vmatpush1.msra.mxu0 0.0
    %974 = vmatprep.subr.mxu0 0.0
    %975 = vmatpush1.msra.mxu0 0.0
    %976 = vmatprep.subr.mxu0 0.0
    %977 = vmatpush1.msra.mxu0 0.0
    %978 = vmatprep.subr.mxu0 0.0
    %979 = vmatpush1.msra.mxu0 0.0
    %980 = vmatprep.subr.mxu0 0.0
    %981 = vmatpush1.msra.mxu0 0.0
    %982 = vmatprep.subr.mxu0 0.0
    %983 = vmatpush1.msra.mxu0 0.0
    %984 = vmatprep.subr.mxu0 0.0
    %985 = vmatpush1.msra.mxu0 0.0
    %986 = vmatprep.subr.mxu0 0.0
    %987 = vmatpush1.msra.mxu0 0.0
    %988 = vmatprep.subr.mxu0 0.0
    %989 = vmatpush1.msra.mxu0 0.0
    %990 = vmatprep.mubr.f32.mxu0 0.0
    %991 = vmatmul.mubr.f32.gmra.mrb[0].mxu0 %v924
    %v992 = vpop.f32.mrb[0].mxu0
    %v993 = vadd.f32 %v844, %v992
    %v994 = vpop.f32.mrb[0].mxu0
    %995 = vdwg.mxu0
    %v996 = vadd.f32 %v918, %v993
    %v997 = vld [vmem:[#allocation4 + $0x60] sm:$0xff]
    %v998 = vld [vmem:[#allocation4 + $0x68] sm:$0xff]
    %v999 = vld [vmem:[#allocation4 + $0x70] sm:$0xff]
    %v1000 = vld [vmem:[#allocation4 + $0x78] sm:$0xff]
    %v1001 = vld [vmem:[#allocation4 + $0x80] sm:$0xff]
    %v1002 = vld [vmem:[#allocation4 + $0x88] sm:$0xff]
    %v1003 = vld [vmem:[#allocation4 + $0x90] sm:$0xff]
    %v1004 = vld [vmem:[#allocation4 + $0x98] sm:$0xff]
    %vm1005 = vcmask 517120
    %v1006 = vsel %vm1005, %v996, 0.0
    %v1007 = vrot.slane %v1006, 4
    %v1008 = vadd.f32 %v1006, %v1007
    %v1009 = vrot.slane %v1008, 2
    %v1010 = vadd.f32 %v1008, %v1009
    %v1011 = vrot.slane %v1010, 1
    %v1012 = vadd.f32 %v1010, %v1011
    %v1013 = vmul.f32 %v996, %v996
    %v1014 = vsel %vm1005, %v1013, 0.0
    %v1015 = vrot.slane %v1014, 4
    %v1016 = vadd.f32 %v1014, %v1015
    %v1017 = vrot.slane %v1016, 2
    %v1018 = vadd.f32 %v1016, %v1017
    %v1019 = vrot.slane %v1018, 1
    %v1020 = vadd.f32 %v1018, %v1019
    %vm1021 = vcmask 523264
    %v1023 = vsel %vm1021, %v1012, 0
    %1025 = vmatprep.subr.mxu0 0.0
    %1026 = vmatpush1.msra.mxu0 %v997
    %1027 = vmatprep.subr.mxu0 0.0
    %1028 = vmatpush1.msra.mxu0 %v998
    %1029 = vmatprep.subr.mxu0 0.0
    %1030 = vmatpush1.msra.mxu0 %v999
    %1031 = vmatprep.subr.mxu0 0.0
    %1032 = vmatpush1.msra.mxu0 %v1000
    %1033 = vmatprep.subr.mxu0 0.0
    %1034 = vmatpush1.msra.mxu0 %v1001
    %1035 = vmatprep.subr.mxu0 0.0
    %1036 = vmatpush1.msra.mxu0 %v1002
    %1037 = vmatprep.subr.mxu0 0.0
    %1038 = vmatpush1.msra.mxu0 %v1003
    %1039 = vmatprep.subr.mxu0 0.0
    %1040 = vmatpush1.msra.mxu0 %v1004
    %1041 = vmatprep.subr.mxu0 0.0
    %1042 = vmatpush1.msra.mxu0 0.0
    %1043 = vmatprep.subr.mxu0 0.0
    %1044 = vmatpush1.msra.mxu0 0.0
    %1045 = vmatprep.subr.mxu0 0.0
    %1046 = vmatpush1.msra.mxu0 0.0
    %1047 = vmatprep.subr.mxu0 0.0
    %1048 = vmatpush1.msra.mxu0 0.0
    %1049 = vmatprep.subr.mxu0 0.0
    %1050 = vmatpush1.msra.mxu0 0.0
    %1051 = vmatprep.subr.mxu0 0.0
    %1052 = vmatpush1.msra.mxu0 0.0
    %1053 = vmatprep.subr.mxu0 0.0
    %1054 = vmatpush1.msra.mxu0 0.0
    %1055 = vmatprep.subr.mxu0 0.0
    %1056 = vmatpush1.msra.mxu0 0.0
    %1057 = vmatprep.subr.mxu0 0.0
    %1058 = vmatpush1.msra.mxu0 0.0
    %1059 = vmatprep.subr.mxu0 0.0
    %1060 = vmatpush1.msra.mxu0 0.0
    %1061 = vmatprep.subr.mxu0 0.0
    %1062 = vmatpush1.msra.mxu0 0.0
    %1063 = vmatprep.subr.mxu0 0.0
    %1064 = vmatpush1.msra.mxu0 0.0
    %1065 = vmatprep.subr.mxu0 0.0
    %1066 = vmatpush1.msra.mxu0 0.0
    %1067 = vmatprep.subr.mxu0 0.0
    %1068 = vmatpush1.msra.mxu0 0.0
    %1069 = vmatprep.subr.mxu0 0.0
    %1070 = vmatpush1.msra.mxu0 0.0
    %1071 = vmatprep.subr.mxu0 0.0
    %1072 = vmatpush1.msra.mxu0 0.0
    %1073 = vmatprep.subr.mxu0 0.0
    %1074 = vmatpush1.msra.mxu0 0.0
    %1075 = vmatprep.subr.mxu0 0.0
    %1076 = vmatpush1.msra.mxu0 0.0
    %1077 = vmatprep.subr.mxu0 0.0
    %1078 = vmatpush1.msra.mxu0 0.0
    %1079 = vmatprep.subr.mxu0 0.0
    %1080 = vmatpush1.msra.mxu0 0.0
    %1081 = vmatprep.subr.mxu0 0.0
    %1082 = vmatpush1.msra.mxu0 0.0
    %1083 = vmatprep.subr.mxu0 0.0
    %1084 = vmatpush1.msra.mxu0 0.0
    %1085 = vmatprep.subr.mxu0 0.0
    %1086 = vmatpush1.msra.mxu0 0.0
    %1087 = vmatprep.subr.mxu0 0.0
    %1088 = vmatpush1.msra.mxu0 0.0
    %1089 = vmatprep.mubr.f32.mxu0 0.0
    %1090 = vmatmul.mubr.f32.gmra.mrb[0].mxu0 %v1023
    %v1091 = vpop.f32.mrb[0].mxu0
    %v1092 = vadd.f32 0.0, %v1091
    %v1093 = vpop.f32.mrb[0].mxu0
    %1094 = vdwg.mxu0
    %v1095 = vmul.f32 %v1092, 0.0625
    %v1097 = vsel %vm1021, %v1020, 0
    %1099 = vmatprep.subr.mxu0 0.0
    %1100 = vmatpush1.msra.mxu0 %v997
    %1101 = vmatprep.subr.mxu0 0.0
    %1102 = vmatpush1.msra.mxu0 %v998
    %1103 = vmatprep.subr.mxu0 0.0
    %1104 = vmatpush1.msra.mxu0 %v999
    %1105 = vmatprep.subr.mxu0 0.0
    %1106 = vmatpush1.msra.mxu0 %v1000
    %1107 = vmatprep.subr.mxu0 0.0
    %1108 = vmatpush1.msra.mxu0 %v1001
    %1109 = vmatprep.subr.mxu0 0.0
    %1110 = vmatpush1.msra.mxu0 %v1002
    %1111 = vmatprep.subr.mxu0 0.0
    %1112 = vmatpush1.msra.mxu0 %v1003
    %1113 = vmatprep.subr.mxu0 0.0
    %1114 = vmatpush1.msra.mxu0 %v1004
    %1115 = vmatprep.subr.mxu0 0.0
    %1116 = vmatpush1.msra.mxu0 0.0
    %1117 = vmatprep.subr.mxu0 0.0
    %1118 = vmatpush1.msra.mxu0 0.0
    %1119 = vmatprep.subr.mxu0 0.0
    %1120 = vmatpush1.msra.mxu0 0.0
    %1121 = vmatprep.subr.mxu0 0.0
    %1122 = vmatpush1.msra.mxu0 0.0
    %1123 = vmatprep.subr.mxu0 0.0
    %1124 = vmatpush1.msra.mxu0 0.0
    %1125 = vmatprep.subr.mxu0 0.0
    %1126 = vmatpush1.msra.mxu0 0.0
    %1127 = vmatprep.subr.mxu0 0.0
    %1128 = vmatpush1.msra.mxu0 0.0
    %1129 = vmatprep.subr.mxu0 0.0
    %1130 = vmatpush1.msra.mxu0 0.0
    %1131 = vmatprep.subr.mxu0 0.0
    %1132 = vmatpush1.msra.mxu0 0.0
    %1133 = vmatprep.subr.mxu0 0.0
    %1134 = vmatpush1.msra.mxu0 0.0
    %1135 = vmatprep.subr.mxu0 0.0
    %1136 = vmatpush1.msra.mxu0 0.0
    %1137 = vmatprep.subr.mxu0 0.0
    %1138 = vmatpush1.msra.mxu0 0.0
    %1139 = vmatprep.subr.mxu0 0.0
    %1140 = vmatpush1.msra.mxu0 0.0
    %1141 = vmatprep.subr.mxu0 0.0
    %1142 = vmatpush1.msra.mxu0 0.0
    %1143 = vmatprep.subr.mxu0 0.0
    %1144 = vmatpush1.msra.mxu0 0.0
    %1145 = vmatprep.subr.mxu0 0.0
    %1146 = vmatpush1.msra.mxu0 0.0
    %1147 = vmatprep.subr.mxu0 0.0
    %1148 = vmatpush1.msra.mxu0 0.0
    %1149 = vmatprep.subr.mxu0 0.0
    %1150 = vmatpush1.msra.mxu0 0.0
    %1151 = vmatprep.subr.mxu0 0.0
    %1152 = vmatpush1.msra.mxu0 0.0
    %1153 = vmatprep.subr.mxu0 0.0
    %1154 = vmatpush1.msra.mxu0 0.0
    %1155 = vmatprep.subr.mxu0 0.0
    %1156 = vmatpush1.msra.mxu0 0.0
    %1157 = vmatprep.subr.mxu0 0.0
    %1158 = vmatpush1.msra.mxu0 0.0
    %1159 = vmatprep.subr.mxu0 0.0
    %1160 = vmatpush1.msra.mxu0 0.0
    %1161 = vmatprep.subr.mxu0 0.0
    %1162 = vmatpush1.msra.mxu0 0.0
    %1163 = vmatprep.mubr.f32.mxu0 0.0
    %1164 = vmatmul.mubr.f32.gmra.mrb[0].mxu0 %v1097
    %v1165 = vpop.f32.mrb[0].mxu0
    %v1166 = vadd.f32 0.0, %v1165
    %v1167 = vpop.f32.mrb[0].mxu0
    %1168 = vdwg.mxu0
    %v1169 = vmul.f32 %v1166, 0.0625
    %v1170 = vmul.f32 %v1095, %v1095
    %v1171 = vsub.f32 %v1169, %v1170
    %v1172 = vld [vmem:[#allocation4 + $0x1a] sm:$0x1]
    %v1173 = vld [vmem:[#allocation4 + $0x1b] sm:$0x1]
    %v1174 = vlaneseq
    %v1175 = vshrl.u32 %v1174, 7
    %v1176 = vsub.s32 0, %v1175
    %v1177 = vrot.slane %v1095, %v1176
    %v1178 = vsub.f32 %v996, %v1177
    %v1179 = vadd.f32 %v1171, 1e-05
    %v1180 = vrsqrt.pop %v1179
    %v1181 = vlaneseq
    %v1182 = vshrl.u32 %v1181, 7
    %v1183 = vsub.s32 0, %v1182
    %v1184 = vrot.slane %v1180, %v1183
    %v1185 = vmul.f32 %v1178, %v1184
    %v1186 = vlaneseq
    %v1187 = vshrl.u32 %v1186, 7
    %v1188 = vsub.s32 0, %v1187
    %v1189 = vrot.slane %v1172, %v1188
    %v1190 = vmul.f32 %v1185, %v1189
    %v1191 = vlaneseq
    %v1192 = vshrl.u32 %v1191, 7
    %v1193 = vsub.s32 0, %v1192
    %v1194 = vrot.slane %v1173, %v1193
    %v1195 = vadd.f32 %v1190, %v1194
    %v1196 = vmax.f32 %v1195, 0.0
    %1197 = vst.msk [vmem:[%s2] sm:$0x3] %vm1005, %v1196
    // Predicated region
    $region18: #{block_height_reducing_filtering.1} parent=1 // pred_check
      _
    $region19: #{block_height_reducing_filtering.1} parent=1 // pred_check_branch
      %1199 = sbr.rel (0) target = $region21
    $region20: #{block_height_reducing_filtering.1} parent=1 // pred_region
      _
    $region21: #{block_height_reducing_filtering.1} parent=1 // pred_fallthru
      _
    // Predicated region
    $region22: #{block_height_reducing_filtering.1} parent=1 // pred_check
      _
    $region23: #{block_height_reducing_filtering.1} parent=1 // pred_check_branch
      %1201 = sbr.rel (0) target = $region25
    $region24: #{block_height_reducing_filtering.1} parent=1 // pred_region
      _
    $region25: #{block_height_reducing_filtering.1} parent=1 // pred_fallthru
      _
    %1202 = vsyncpa [#allocation3], 1
    %1203 = vsyncpa [#allocation5], 1

</llo_original>
